<compile_context>
chip_gen: v6e
topology: v6e:2x2x1
jax: 0.10.0
libtpu: 0.0.40
codegen_flags: <defaults>
</compile_context>

<pallas_src>
import numpy as np
import jax
import jax.numpy as jnp
from jax.experimental import pallas as pl
from jax.experimental.pallas import tpu as pltpu

# ---------------- static problem sizes ----------------
N = 16            # nodes
E = 16            # edges (single tile)
IN_DIM = 5        # 2x0e + 1x1o
SH_DIM = 4        # 1x0e + 1x1o
OUT_DIM = 10      # 4x0e + 2x1o
F = 8             # n_edge_features
H = 8             # hidden_features
P = 18            # tp.weight_numel
IS = IN_DIM * SH_DIM           # 20
EW = IN_DIM + SH_DIM + F + 1   # 18 : packed edge-input width [x | sh | ea | 1]
EPS = 1e-5

N_SCALAR_OUT = 4  # 4x0e scalars
N_VEC_OUT = 2     # 2x1o vectors


def build_path_tensor():
    """Fixed path tensor T[p, i, j, o] for the fully-connected tensor product."""
    T = np.zeros((P, IN_DIM, SH_DIM, OUT_DIM), dtype=np.float32)
    # instruction 1: 0e(2) x 0e(1) -> 0e(4), weights p = u*4 + w
    a1 = 1.0 / np.sqrt(2.0)
    for u in range(2):
        for w in range(4):
            T[u * 4 + w, u, 0, w] = a1
    # instruction 2: 0e(2) x 1o(1) -> 1o(2), weights p = 8 + u*2 + w
    a2 = 1.0 / np.sqrt(2.0)
    for u in range(2):
        for w in range(2):
            for m in range(3):
                T[8 + u * 2 + w, u, 1 + m, 4 + 3 * w + m] = a2
    # instruction 3: 1o(1) x 0e(1) -> 1o(2), weights p = 12 + w
    for w in range(2):
        for m in range(3):
            T[12 + w, 2 + m, 0, 4 + 3 * w + m] = 1.0
    # instruction 4: 1o(1) x 1o(1) -> 0e(4), weights p = 14 + w
    a4 = 1.0 / np.sqrt(3.0)
    for w in range(4):
        for m in range(3):
            T[14 + w, 2 + m, 1 + m, w] = a4
    return jnp.asarray(T)           # (P, IN_DIM, SH_DIM, OUT_DIM)


def build_selection_matrices():
    """Constant 0/1 matrices so every Khatri-Rao expansion runs on the MXU."""
    A = np.zeros((EW, IS), np.float32)       # picks x[i]  -> column i*SH_DIM + j
    B = np.zeros((EW, IS), np.float32)       # picks sh[j] -> column i*SH_DIM + j
    for i in range(IN_DIM):
        for j in range(SH_DIM):
            A[i, i * SH_DIM + j] = 1.0
            B[IN_DIM + j, i * SH_DIM + j] = 1.0
    Rw = np.zeros((P, P * IS), np.float32)   # replicates w_fc[p] across q
    Rb = np.zeros((IS, P * IS), np.float32)  # tiles bil[q] across p
    for p in range(P):
        for q in range(IS):
            Rw[p, p * IS + q] = 1.0
            Rb[q, p * IS + q] = 1.0
    ab = jnp.asarray(np.concatenate([A, B], axis=1))   # (EW, 2*IS)
    return ab, jnp.asarray(Rw), jnp.asarray(Rb)


def build_bn_slab(bnw, bnb):
    """(16,16) slab: rows 0..9 = per-irrep group-average matrix, row 10 =
    centering mask, row 11 = per-lane affine weight, row 12 = per-lane bias."""
    base = np.zeros((16, 16), np.float32)
    g = np.eye(OUT_DIM, dtype=np.float32)
    for v in range(N_VEC_OUT):                 # vectors: average their 3 lanes
        s = N_SCALAR_OUT + 3 * v
        g[s:s + 3, s:s + 3] = 1.0 / 3.0
    base[:OUT_DIM, :OUT_DIM] = g
    base[OUT_DIM, :N_SCALAR_OUT] = 1.0         # only scalar irreps are centered
    slab = jnp.asarray(base)
    w_full = jnp.concatenate([bnw[0, :N_SCALAR_OUT],
                              jnp.repeat(bnw[0, N_SCALAR_OUT:], 3)])   # (OUT_DIM,)
    slab = slab.at[OUT_DIM + 1, :OUT_DIM].set(w_full)
    slab = slab.at[OUT_DIM + 2, :N_SCALAR_OUT].set(bnb[0])
    return slab


# ---------------- the Pallas kernel (single grid step) ----------------
def tpconv_kernel(edges_ref, na_ref, w1_ref, w2_ref, ab_ref, rw_ref, rb_ref,
                  tflat_ref, scat_ref, bn_ref, out_ref):
    edges = edges_ref[...]                                               # (E, EW)

    # --- edge MLP: Linear -> ReLU -> (Dropout p=0) -> Linear, biases folded ---
    h = jnp.maximum(jnp.dot(edges, w1_ref[...],
                            preferred_element_type=jnp.float32), 0.0)    # (E, H+1); h[:, H] == 1
    w_fc = jnp.dot(h, w2_ref[...], preferred_element_type=jnp.float32)   # (E, P)

    # --- bilinear x (x) sh via one MXU matmul against [A | B], then lane split ---
    xb = jnp.dot(edges, ab_ref[...], preferred_element_type=jnp.float32)  # (E, 2*IS)
    bil = xb[:, :IS] * xb[:, IS:]                                         # (E, IS)

    # --- Khatri-Rao expansion on the MXU (0/1 replication matrices) ---
    kr = (jnp.dot(w_fc, rw_ref[...], preferred_element_type=jnp.float32)
          * jnp.dot(bil, rb_ref[...], preferred_element_type=jnp.float32))  # (E, P*IS)

    # --- weighted tensor product: one matmul against the flattened path tensor ---
    tp = jnp.dot(kr, tflat_ref[...], preferred_element_type=jnp.float32)    # (E, OUT_DIM)

    # --- scatter-mean (precomputed one-hot / deg matrix) + residual add ---
    out = (jnp.dot(scat_ref[...], tp, preferred_element_type=jnp.float32)
           + na_ref[...])                                                    # (N, OUT_DIM)

    # --- irreps batch-norm (training-mode stats), constants from the packed slab ---
    bn = bn_ref[...]
    gmat = bn[:OUT_DIM, :OUT_DIM]
    cmask = bn[OUT_DIM:OUT_DIM + 1, :OUT_DIM]
    wvec = bn[OUT_DIM + 1:OUT_DIM + 2, :OUT_DIM]
    bvec = bn[OUT_DIM + 2:OUT_DIM + 3, :OUT_DIM]

    col_mean = jnp.mean(out, axis=0, keepdims=True)                      # (1, OUT_DIM)
    centered = out - col_mean * cmask                                    # center scalars only
    sq = centered * centered
    group = jnp.mean(jnp.dot(sq, gmat, preferred_element_type=jnp.float32),
                     axis=0, keepdims=True)                              # per-irrep 2nd moment
    scale = jax.lax.rsqrt(group + EPS) * wvec
    out_ref[...] = centered * scale + bvec


def tensor_product_conv(node_attr, edge_index, edge_attr, edge_sh, params):
    w1, b1, w2, b2, T4, bnw, bnb = params
    src, dst = edge_index[0], edge_index[1]

    # ---- glue (plain JAX): gather, packing, scatter-mean matrix, constants ----
    xg = jnp.take(node_attr, dst, axis=0)                                   # (E, IN_DIM)
    edges = jnp.concatenate(
        [xg, edge_sh, edge_attr, jnp.ones((E, 1), jnp.float32)], axis=1)    # (E, EW)

    onehot = (jnp.arange(N)[:, None] == src[None, :]).astype(jnp.float32)   # (N, E)
    deg = jnp.sum(onehot, axis=1, keepdims=True)
    scat = onehot / jnp.maximum(deg, 1.0)                                   # scatter-MEAN matrix

    na_pad = jnp.pad(node_attr, ((0, 0), (0, OUT_DIM - IN_DIM)))            # residual

    # first Linear: bias row + constant-1 hidden unit that carries b2 through ReLU
    EA0 = IN_DIM + SH_DIM
    w1f = jnp.zeros((EW, H + 1), jnp.float32)
    w1f = w1f.at[EA0:EA0 + F, :H].set(w1)
    w1f = w1f.at[EA0 + F, :H].set(b1[0])
    w1f = w1f.at[EA0 + F, H].set(1.0)
    w2f = jnp.concatenate([w2, b2], axis=0)                                 # (H+1, P)

    ab, rw, rb = build_selection_matrices()
    tflat = T4.reshape(P * IS, OUT_DIM)                                     # natural width
    bn_slab = build_bn_slab(bnw, bnb)

    full = lambda r, c: pl.BlockSpec((r, c), lambda i: (0, 0))

    out = pl.pallas_call(
        tpconv_kernel,
        out_shape=jax.ShapeDtypeStruct((N, OUT_DIM), jnp.float32),
        grid=(1,),
        in_specs=[
            full(E, EW),            # packed edge inputs  [x | sh | ea | 1]
            full(N, OUT_DIM),       # padded node_attr (residual)
            full(EW, H + 1),        # fused fc layer-1 (bias row + constant-1 unit)
            full(H + 1, P),         # fused fc layer-2 (bias row)
            full(EW, 2 * IS),       # bilinear selection matrices [A | B]
            full(P, P * IS),        # Khatri-Rao replication for w_fc
            full(IS, P * IS),       # Khatri-Rao replication for bil
            full(P * IS, OUT_DIM),  # flattened path tensor (natural width)
            full(N, E),             # scatter-mean matrix
            full(16, 16),           # BN slab: gmat / cmask / weight / bias
        ],
        out_specs=full(N, OUT_DIM),
        compiler_params=pltpu.CompilerParams(dimension_semantics=("arbitrary",)),
    )(edges, na_pad, w1f, w2f, ab, rw, rb, tflat, scat, bn_slab)

    return out


# ---------------- plain-JAX reference (same math) ----------------
def reference(node_attr, edge_index, edge_attr, edge_sh, params):
    w1, b1, w2, b2, T4, bnw, bnb = params
    src, dst = edge_index[0], edge_index[1]
    x = node_attr[dst]
    h = jax.nn.relu(edge_attr @ w1 + b1)
    w_fc = h @ w2 + b2
    tp = jnp.einsum('ep,ei,ej,pijo->eo', w_fc, x, edge_sh, T4)
    sums = jax.ops.segment_sum(tp, src, num_segments=N)
    counts = jax.ops.segment_sum(jnp.ones((E,), jnp.float32), src, num_segments=N)
    out = sums / jnp.maximum(counts, 1.0)[:, None]
    out = out + jnp.pad(node_attr, ((0, 0), (0, OUT_DIM - IN_DIM)))
    s = out[:, :N_SCALAR_OUT]
    s = s - jnp.mean(s, axis=0, keepdims=True)
    s = (s * jax.lax.rsqrt(jnp.mean(s * s, axis=0, keepdims=True) + EPS)
         * bnw[:, :N_SCALAR_OUT] + bnb)
    v = out[:, N_SCALAR_OUT:].reshape(N, N_VEC_OUT, 3)
    v_norm = jnp.mean(jnp.mean(v * v, axis=2), axis=0)
    v = v * jax.lax.rsqrt(v_norm + EPS)[None, :, None] * bnw[0, N_SCALAR_OUT:][None, :, None]
    return jnp.concatenate([s, v.reshape(N, N_VEC_OUT * 3)], axis=1)


if __name__ == "__main__":
    key = jax.random.PRNGKey(0)
    ks = jax.random.split(key, 8)

    node_attr = jax.random.normal(ks[0], (N, IN_DIM), jnp.float32)
    edge_index = jax.random.randint(ks[1], (2, E), 0, N, jnp.int32)
    edge_attr = jax.random.normal(ks[2], (E, F), jnp.float32)
    edge_sh = jax.random.normal(ks[3], (E, SH_DIM), jnp.float32)

    # deterministic parameter init (fc: scaled normal; batch-norm: ones / zeros)
    w1 = jax.random.normal(ks[4], (F, H), jnp.float32) / np.sqrt(F)
    b1 = jnp.zeros((1, H), jnp.float32)
    w2 = jax.random.normal(ks[5], (H, P), jnp.float32) / np.sqrt(H)
    b2 = jnp.zeros((1, P), jnp.float32)
    T4 = build_path_tensor()
    bnw = jnp.ones((1, N_SCALAR_OUT + N_VEC_OUT), jnp.float32)
    bnb = jnp.zeros((1, N_SCALAR_OUT), jnp.float32)
    params = (w1, b1, w2, b2, T4, bnw, bnb)

    out = tensor_product_conv(node_attr, edge_index, edge_attr, edge_sh, params)
    out = jax.block_until_ready(out)

    ref = reference(node_attr, edge_index, edge_attr, edge_sh, params)
    np.testing.assert_allclose(np.asarray(out), np.asarray(ref), rtol=1e-4, atol=1e-4)

    print("KERNEL_OK")
</pallas_src>

<mosaic_0001>
module attributes {stable_mosaic.version = 11 : i64} {
  func.func @tpconv_kernel(%arg0: i32, %arg1: memref<16x18xf32, #tpu.memory_space<vmem>>, %arg2: memref<16x10xf32, #tpu.memory_space<vmem>>, %arg3: memref<18x9xf32, #tpu.memory_space<vmem>>, %arg4: memref<9x18xf32, #tpu.memory_space<vmem>>, %arg5: memref<18x40xf32, #tpu.memory_space<vmem>>, %arg6: memref<18x360xf32, #tpu.memory_space<vmem>>, %arg7: memref<20x360xf32, #tpu.memory_space<vmem>>, %arg8: memref<360x10xf32, #tpu.memory_space<vmem>>, %arg9: memref<16x16xf32, #tpu.memory_space<vmem>>, %arg10: memref<16x16xf32, #tpu.memory_space<vmem>>, %arg11: memref<16x10xf32, #tpu.memory_space<vmem>>) attributes {dimension_semantics = [#tpu.dimension_semantics<arbitrary>], iteration_bounds = array<i64: 1>, scalar_prefetch = 0 : i64, scratch_operands = 0 : i64, tpu.core_type = #tpu.core_type<tc>, window_params = [{pipeline_mode = #tpu.pipeline_mode<synchronous>, transform_indices = @transform_0, window_bounds = array<i64: 16, 18>}, {pipeline_mode = #tpu.pipeline_mode<synchronous>, transform_indices = @transform_1, window_bounds = array<i64: 16, 10>}, {pipeline_mode = #tpu.pipeline_mode<synchronous>, transform_indices = @transform_2, window_bounds = array<i64: 18, 9>}, {pipeline_mode = #tpu.pipeline_mode<synchronous>, transform_indices = @transform_3, window_bounds = array<i64: 9, 18>}, {pipeline_mode = #tpu.pipeline_mode<synchronous>, transform_indices = @transform_4, window_bounds = array<i64: 18, 40>}, {pipeline_mode = #tpu.pipeline_mode<synchronous>, transform_indices = @transform_5, window_bounds = array<i64: 18, 360>}, {pipeline_mode = #tpu.pipeline_mode<synchronous>, transform_indices = @transform_6, window_bounds = array<i64: 20, 360>}, {pipeline_mode = #tpu.pipeline_mode<synchronous>, transform_indices = @transform_7, window_bounds = array<i64: 360, 10>}, {pipeline_mode = #tpu.pipeline_mode<synchronous>, transform_indices = @transform_8, window_bounds = array<i64: 16, 16>}, {pipeline_mode = #tpu.pipeline_mode<synchronous>, transform_indices = @transform_9, window_bounds = array<i64: 16, 16>}, {pipeline_mode = #tpu.pipeline_mode<synchronous>, transform_indices = @transform_10, window_bounds = array<i64: 16, 10>}]} {
    %c0 = arith.constant 0 : index
    %c0_0 = arith.constant 0 : index
    %0 = vector.load %arg1[%c0, %c0_0] : memref<16x18xf32, #tpu.memory_space<vmem>>, vector<16x18xf32>
    %c0_1 = arith.constant 0 : index
    %c0_2 = arith.constant 0 : index
    %1 = vector.load %arg3[%c0_1, %c0_2] : memref<18x9xf32, #tpu.memory_space<vmem>>, vector<18x9xf32>
    %cst = arith.constant dense<0.000000e+00> : vector<16x9xf32>
    %2 = tpu.matmul %0, %1, %cst {dimension_numbers = #tpu.dot_dimension_numbers<[1], [0], [0], [1], [0, 0, 1, 1], [], []>} : vector<16x18xf32>, vector<18x9xf32>, vector<16x9xf32> -> vector<16x9xf32>
    %cst_3 = arith.constant 0.000000e+00 : f32
    %3 = vector.broadcast %cst_3 : f32 to vector<16x9xf32>
    %4 = arith.maximumf %2, %3 : vector<16x9xf32>
    %c0_4 = arith.constant 0 : index
    %c0_5 = arith.constant 0 : index
    %5 = vector.load %arg4[%c0_4, %c0_5] : memref<9x18xf32, #tpu.memory_space<vmem>>, vector<9x18xf32>
    %cst_6 = arith.constant dense<0.000000e+00> : vector<16x18xf32>
    %6 = tpu.matmul %4, %5, %cst_6 {dimension_numbers = #tpu.dot_dimension_numbers<[1], [0], [0], [1], [0, 0, 1, 1], [], []>} : vector<16x9xf32>, vector<9x18xf32>, vector<16x18xf32> -> vector<16x18xf32>
    %c0_7 = arith.constant 0 : index
    %c0_8 = arith.constant 0 : index
    %7 = vector.load %arg5[%c0_7, %c0_8] : memref<18x40xf32, #tpu.memory_space<vmem>>, vector<18x40xf32>
    %cst_9 = arith.constant dense<0.000000e+00> : vector<16x40xf32>
    %8 = tpu.matmul %0, %7, %cst_9 {dimension_numbers = #tpu.dot_dimension_numbers<[1], [0], [0], [1], [0, 0, 1, 1], [], []>} : vector<16x18xf32>, vector<18x40xf32>, vector<16x40xf32> -> vector<16x40xf32>
    %9 = vector.extract_strided_slice %8 {offsets = [0, 0], sizes = [16, 20], strides = [1, 1]} : vector<16x40xf32> to vector<16x20xf32>
    %10 = vector.extract_strided_slice %8 {offsets = [0, 20], sizes = [16, 20], strides = [1, 1]} : vector<16x40xf32> to vector<16x20xf32>
    %11 = arith.mulf %9, %10 : vector<16x20xf32>
    %c0_10 = arith.constant 0 : index
    %c0_11 = arith.constant 0 : index
    %12 = vector.load %arg6[%c0_10, %c0_11] : memref<18x360xf32, #tpu.memory_space<vmem>>, vector<18x360xf32>
    %cst_12 = arith.constant dense<0.000000e+00> : vector<16x360xf32>
    %13 = tpu.matmul %6, %12, %cst_12 {dimension_numbers = #tpu.dot_dimension_numbers<[1], [0], [0], [1], [0, 0, 1, 1], [], []>} : vector<16x18xf32>, vector<18x360xf32>, vector<16x360xf32> -> vector<16x360xf32>
    %c0_13 = arith.constant 0 : index
    %c0_14 = arith.constant 0 : index
    %14 = vector.load %arg7[%c0_13, %c0_14] : memref<20x360xf32, #tpu.memory_space<vmem>>, vector<20x360xf32>
    %cst_15 = arith.constant dense<0.000000e+00> : vector<16x360xf32>
    %15 = tpu.matmul %11, %14, %cst_15 {dimension_numbers = #tpu.dot_dimension_numbers<[1], [0], [0], [1], [0, 0, 1, 1], [], []>} : vector<16x20xf32>, vector<20x360xf32>, vector<16x360xf32> -> vector<16x360xf32>
    %16 = arith.mulf %13, %15 : vector<16x360xf32>
    %c0_16 = arith.constant 0 : index
    %c0_17 = arith.constant 0 : index
    %17 = vector.load %arg8[%c0_16, %c0_17] : memref<360x10xf32, #tpu.memory_space<vmem>>, vector<360x10xf32>
    %cst_18 = arith.constant dense<0.000000e+00> : vector<16x10xf32>
    %18 = tpu.matmul %16, %17, %cst_18 {dimension_numbers = #tpu.dot_dimension_numbers<[1], [0], [0], [1], [0, 0, 1, 1], [], []>} : vector<16x360xf32>, vector<360x10xf32>, vector<16x10xf32> -> vector<16x10xf32>
    %c0_19 = arith.constant 0 : index
    %c0_20 = arith.constant 0 : index
    %19 = vector.load %arg9[%c0_19, %c0_20] : memref<16x16xf32, #tpu.memory_space<vmem>>, vector<16x16xf32>
    %cst_21 = arith.constant dense<0.000000e+00> : vector<16x10xf32>
    %20 = tpu.matmul %19, %18, %cst_21 {dimension_numbers = #tpu.dot_dimension_numbers<[1], [0], [0], [1], [0, 0, 1, 1], [], []>} : vector<16x16xf32>, vector<16x10xf32>, vector<16x10xf32> -> vector<16x10xf32>
    %c0_22 = arith.constant 0 : index
    %c0_23 = arith.constant 0 : index
    %21 = vector.load %arg2[%c0_22, %c0_23] : memref<16x10xf32, #tpu.memory_space<vmem>>, vector<16x10xf32>
    %22 = arith.addf %20, %21 : vector<16x10xf32>
    %c0_24 = arith.constant 0 : index
    %c0_25 = arith.constant 0 : index
    %23 = vector.load %arg10[%c0_24, %c0_25] : memref<16x16xf32, #tpu.memory_space<vmem>>, vector<16x16xf32>
    %24 = vector.extract_strided_slice %23 {offsets = [0, 0], sizes = [10, 10], strides = [1, 1]} : vector<16x16xf32> to vector<10x10xf32>
    %25 = vector.extract_strided_slice %23 {offsets = [10, 0], sizes = [1, 10], strides = [1, 1]} : vector<16x16xf32> to vector<1x10xf32>
    %26 = vector.extract_strided_slice %23 {offsets = [11, 0], sizes = [1, 10], strides = [1, 1]} : vector<16x16xf32> to vector<1x10xf32>
    %27 = vector.extract_strided_slice %23 {offsets = [12, 0], sizes = [1, 10], strides = [1, 1]} : vector<16x16xf32> to vector<1x10xf32>
    %cst_26 = arith.constant dense<0.000000e+00> : vector<10xf32>
    %28 = vector.multi_reduction <add>, %22, %cst_26 [0] : vector<16x10xf32> to vector<10xf32>
    %29 = vector.shape_cast %28 : vector<10xf32> to vector<1x10xf32>
    %cst_27 = arith.constant 1.600000e+01 : f32
    %30 = vector.broadcast %cst_27 : f32 to vector<1x10xf32>
    %31 = arith.divf %29, %30 : vector<1x10xf32>
    %32 = arith.mulf %31, %25 : vector<1x10xf32>
    %33 = vector.broadcast %32 : vector<1x10xf32> to vector<16x10xf32>
    %34 = arith.subf %22, %33 : vector<16x10xf32>
    %35 = arith.mulf %34, %34 : vector<16x10xf32>
    %cst_28 = arith.constant dense<0.000000e+00> : vector<16x10xf32>
    %36 = tpu.matmul %35, %24, %cst_28 {dimension_numbers = #tpu.dot_dimension_numbers<[1], [0], [0], [1], [0, 0, 1, 1], [], []>} : vector<16x10xf32>, vector<10x10xf32>, vector<16x10xf32> -> vector<16x10xf32>
    %cst_29 = arith.constant dense<0.000000e+00> : vector<10xf32>
    %37 = vector.multi_reduction <add>, %36, %cst_29 [0] : vector<16x10xf32> to vector<10xf32>
    %38 = vector.shape_cast %37 : vector<10xf32> to vector<1x10xf32>
    %cst_30 = arith.constant 1.600000e+01 : f32
    %39 = vector.broadcast %cst_30 : f32 to vector<1x10xf32>
    %40 = arith.divf %38, %39 : vector<1x10xf32>
    %cst_31 = arith.constant 9.99999974E-6 : f32
    %41 = vector.broadcast %cst_31 : f32 to vector<1x10xf32>
    %42 = arith.addf %40, %41 : vector<1x10xf32>
    %43 = math.rsqrt %42 : vector<1x10xf32>
    %44 = arith.mulf %43, %26 : vector<1x10xf32>
    %45 = vector.broadcast %44 : vector<1x10xf32> to vector<16x10xf32>
    %46 = arith.mulf %34, %45 : vector<16x10xf32>
    %47 = vector.broadcast %27 : vector<1x10xf32> to vector<16x10xf32>
    %48 = arith.addf %46, %47 : vector<16x10xf32>
    %c0_32 = arith.constant 0 : index
    %c0_33 = arith.constant 0 : index
    %49 = vector.load %arg11[%c0_32, %c0_33] : memref<16x10xf32, #tpu.memory_space<vmem>>, vector<16x10xf32>
    tpu.vector_store %arg11[%c0_32, %c0_33], %48 {strides = array<i32>} : memref<16x10xf32, #tpu.memory_space<vmem>>, vector<16x10xf32>,
    return
  }
  func.func @transform_0(%arg0: i32) -> (i32, i32) {
    %c0_i32 = arith.constant 0 : i32
    %c0_i32_0 = arith.constant 0 : i32
    %c0_i32_1 = arith.constant 0 : i32
    return %c0_i32, %c0_i32_0 : i32, i32
  }
  func.func @transform_1(%arg0: i32) -> (i32, i32) {
    %c0_i32 = arith.constant 0 : i32
    %c0_i32_0 = arith.constant 0 : i32
    %c0_i32_1 = arith.constant 0 : i32
    return %c0_i32, %c0_i32_0 : i32, i32
  }
  func.func @transform_2(%arg0: i32) -> (i32, i32) {
    %c0_i32 = arith.constant 0 : i32
    %c0_i32_0 = arith.constant 0 : i32
    %c0_i32_1 = arith.constant 0 : i32
    return %c0_i32, %c0_i32_0 : i32, i32
  }
  func.func @transform_3(%arg0: i32) -> (i32, i32) {
    %c0_i32 = arith.constant 0 : i32
    %c0_i32_0 = arith.constant 0 : i32
    %c0_i32_1 = arith.constant 0 : i32
    return %c0_i32, %c0_i32_0 : i32, i32
  }
  func.func @transform_4(%arg0: i32) -> (i32, i32) {
    %c0_i32 = arith.constant 0 : i32
    %c0_i32_0 = arith.constant 0 : i32
    %c0_i32_1 = arith.constant 0 : i32
    return %c0_i32, %c0_i32_0 : i32, i32
  }
  func.func @transform_5(%arg0: i32) -> (i32, i32) {
    %c0_i32 = arith.constant 0 : i32
    %c0_i32_0 = arith.constant 0 : i32
    %c0_i32_1 = arith.constant 0 : i32
    return %c0_i32, %c0_i32_0 : i32, i32
  }
  func.func @transform_6(%arg0: i32) -> (i32, i32) {
    %c0_i32 = arith.constant 0 : i32
    %c0_i32_0 = arith.constant 0 : i32
    %c0_i32_1 = arith.constant 0 : i32
    return %c0_i32, %c0_i32_0 : i32, i32
  }
  func.func @transform_7(%arg0: i32) -> (i32, i32) {
    %c0_i32 = arith.constant 0 : i32
    %c0_i32_0 = arith.constant 0 : i32
    %c0_i32_1 = arith.constant 0 : i32
    return %c0_i32, %c0_i32_0 : i32, i32
  }
  func.func @transform_8(%arg0: i32) -> (i32, i32) {
    %c0_i32 = arith.constant 0 : i32
    %c0_i32_0 = arith.constant 0 : i32
    %c0_i32_1 = arith.constant 0 : i32
    return %c0_i32, %c0_i32_0 : i32, i32
  }
  func.func @transform_9(%arg0: i32) -> (i32, i32) {
    %c0_i32 = arith.constant 0 : i32
    %c0_i32_0 = arith.constant 0 : i32
    %c0_i32_1 = arith.constant 0 : i32
    return %c0_i32, %c0_i32_0 : i32, i32
  }
  func.func @transform_10(%arg0: i32) -> (i32, i32) {
    %c0_i32 = arith.constant 0 : i32
    %c0_i32_0 = arith.constant 0 : i32
    %c0_i32_1 = arith.constant 0 : i32
    return %c0_i32, %c0_i32_0 : i32, i32
  }
}

</mosaic_0001>

<llo_original>
// kernel: tpu_custom_call.1
$region0: #{tpu_custom_call.1}
  #allocation0 [shape = 'u32[]', space=smem, size = 0x4, offset = 0x4, fixed_abs, tag = 'smem constant byte address 0x4 - core index']
  #allocation1 [shape = 'u32[144,128]{1,0:T(1,128)}', space=vmem, size = 0x12000, scoped, tag = 'internal scratch']
  %s0 = inlined_call_operand.vmem [shape: f32[16,18], index: 0, kind: input, shape index: {}]
  %s1 = inlined_call_operand.vmem [shape: f32[16,10], index: 1, kind: input, shape index: {}]
  %s2 = inlined_call_operand.vmem [shape: f32[18,9], index: 2, kind: input, shape index: {}]
  %s3 = inlined_call_operand.vmem [shape: f32[9,18], index: 3, kind: input, shape index: {}]
  %s4 = inlined_call_operand.vmem [shape: f32[18,40], index: 4, kind: input, shape index: {}]
  %s5 = inlined_call_operand.vmem [shape: f32[18,360], index: 5, kind: input, shape index: {}]
  %s6 = inlined_call_operand.vmem [shape: f32[20,360], index: 6, kind: input, shape index: {}]
  %s7 = inlined_call_operand.vmem [shape: f32[360,10], index: 7, kind: input, shape index: {}]
  %s8 = inlined_call_operand.vmem [shape: f32[16,16], index: 8, kind: input, shape index: {}]
  %s9 = inlined_call_operand.vmem [shape: f32[16,16], index: 9, kind: input, shape index: {}]
  %s10 = inlined_call_operand.hbm [shape: f32[16,10], index: 10, kind: output, shape index: {}]
  %s11 = sld [smem:[#allocation0]]
  $region50: #{tpu_custom_call.1} parent=0
    _
  %s13 = ssub.s32 1, %s11
  %s14 = scalar_select 0, %s13, %s11
  $region1: #{tpu_custom_call.1} parent=0
    #allocation2 [shape = 'u8[8192]{0}', space=vmem, size = 0x2000, scoped, tag = 'output window, operand 0, single buffered']
    #allocation3 [shape = 's32[1]{0}', space=sflag, size = 0x4, scoped, tag = 'scoped memory for tpu_custom_call.1']
    %15 = vsyncpa [#allocation3], 0
    // Predicated region
    $region2: #{tpu_custom_call.1} parent=1 // pred_check
      _
    $region3: #{tpu_custom_call.1} parent=1 // pred_check_branch
      %17 = sbr.rel (0) target = $region5
    $region4: #{tpu_custom_call.1} parent=1 // pred_region
      _
    $region5: #{tpu_custom_call.1} parent=1 // pred_fallthru
      _
    // Predicated region
    $region6: #{tpu_custom_call.1} parent=1 // pred_check
      _
    $region7: #{tpu_custom_call.1} parent=1 // pred_check_branch
      %19 = sbr.rel (0) target = $region9
    $region8: #{tpu_custom_call.1} parent=1 // pred_region
      _
    $region9: #{tpu_custom_call.1} parent=1 // pred_fallthru
      _
    // Predicated region
    $region10: #{tpu_custom_call.1} parent=1 // pred_check
      _
    $region11: #{tpu_custom_call.1} parent=1 // pred_check_branch
      %21 = sbr.rel (0) target = $region13
    $region12: #{tpu_custom_call.1} parent=1 // pred_region
      _
    $region13: #{tpu_custom_call.1} parent=1 // pred_fallthru
      _
    // Predicated region
    $region14: #{tpu_custom_call.1} parent=1 // pred_check
      _
    $region15: #{tpu_custom_call.1} parent=1 // pred_check_branch
      %23 = sbr.rel (0) target = $region17
    $region16: #{tpu_custom_call.1} parent=1 // pred_region
      _
    $region17: #{tpu_custom_call.1} parent=1 // pred_fallthru
      _
    // Predicated region
    $region18: #{tpu_custom_call.1} parent=1 // pred_check
      _
    $region19: #{tpu_custom_call.1} parent=1 // pred_check_branch
      %25 = sbr.rel (0) target = $region21
    $region20: #{tpu_custom_call.1} parent=1 // pred_region
      _
    $region21: #{tpu_custom_call.1} parent=1 // pred_fallthru
      _
    // Predicated region
    $region22: #{tpu_custom_call.1} parent=1 // pred_check
      _
    $region23: #{tpu_custom_call.1} parent=1 // pred_check_branch
      %27 = sbr.rel (0) target = $region25
    $region24: #{tpu_custom_call.1} parent=1 // pred_region
      _
    $region25: #{tpu_custom_call.1} parent=1 // pred_fallthru
      _
    // Predicated region
    $region26: #{tpu_custom_call.1} parent=1 // pred_check
      _
    $region27: #{tpu_custom_call.1} parent=1 // pred_check_branch
      %29 = sbr.rel (0) target = $region29
    $region28: #{tpu_custom_call.1} parent=1 // pred_region
      _
    $region29: #{tpu_custom_call.1} parent=1 // pred_fallthru
      _
    // Predicated region
    $region30: #{tpu_custom_call.1} parent=1 // pred_check
      _
    $region31: #{tpu_custom_call.1} parent=1 // pred_check_branch
      %31 = sbr.rel (0) target = $region33
    $region32: #{tpu_custom_call.1} parent=1 // pred_region
      _
    $region33: #{tpu_custom_call.1} parent=1 // pred_fallthru
      _
    // Predicated region
    $region34: #{tpu_custom_call.1} parent=1 // pred_check
      _
    $region35: #{tpu_custom_call.1} parent=1 // pred_check_branch
      %33 = sbr.rel (0) target = $region37
    $region36: #{tpu_custom_call.1} parent=1 // pred_region
      _
    $region37: #{tpu_custom_call.1} parent=1 // pred_fallthru
      _
    // Predicated region
    $region38: #{tpu_custom_call.1} parent=1 // pred_check
      _
    $region39: #{tpu_custom_call.1} parent=1 // pred_check_branch
      %35 = sbr.rel (0) target = $region41
    $region40: #{tpu_custom_call.1} parent=1 // pred_region
      _
    $region41: #{tpu_custom_call.1} parent=1 // pred_fallthru
      _
    %v36 = vld [vmem:[%s0] sm:$0xff]
    %v37 = vld [vmem:[%s0 + $0x8] sm:$0xff]
    %v38 = vld [vmem:[%s2] sm:$0xff]
    %v39 = vld [vmem:[%s2 + $0x8] sm:$0xff]
    %v40 = vld [vmem:[%s2 + $0x10] sm:$0x3]
    %vm41 = vcmask 146432
    %v43 = vsel %vm41, %v36, 0
    %v46 = vsel %vm41, %v37, 0
    %vm48 = vcmask 1041408
    %v50 = vsel %vm48, %v40, 0
    %52 = vmatprep.subr.mxu0 0.0
    %53 = vmatpush1.msra.mxu0 0.0
    %54 = vmatprep.subr.mxu0 0.0
    %55 = vmatpush1.msra.mxu0 0.0
    %56 = vmatprep.subr.mxu0 0.0
    %57 = vmatpush1.msra.mxu0 0.0
    %58 = vmatprep.subr.mxu0 0.0
    %59 = vmatpush1.msra.mxu0 0.0
    %60 = vmatprep.subr.mxu0 0.0
    %61 = vmatpush1.msra.mxu0 0.0
    %62 = vmatprep.subr.mxu0 0.0
    %63 = vmatpush1.msra.mxu0 0.0
    %64 = vmatprep.subr.mxu0 0.0
    %65 = vmatpush1.msra.mxu0 0.0
    %66 = vmatprep.subr.mxu0 0.0
    %67 = vmatpush1.msra.mxu0 0.0
    %68 = vmatprep.subr.mxu0 0.0
    %69 = vmatpush1.msra.mxu0 0.0
    %70 = vmatprep.subr.mxu0 0.0
    %71 = vmatpush1.msra.mxu0 0.0
    %72 = vmatprep.subr.mxu0 0.0
    %73 = vmatpush1.msra.mxu0 0.0
    %74 = vmatprep.subr.mxu0 0.0
    %75 = vmatpush1.msra.mxu0 0.0
    %76 = vmatprep.subr.mxu0 0.0
    %77 = vmatpush1.msra.mxu0 0.0
    %78 = vmatprep.subr.mxu0 0.0
    %79 = vmatpush1.msra.mxu0 %v50
    %80 = vmatprep.subr.mxu0 0.0
    %81 = vmatpush1.msra.mxu0 %v39
    %82 = vmatprep.subr.mxu0 0.0
    %83 = vmatpush1.msra.mxu0 %v38
    %84 = vmatprep.subr.mxu0 0.0
    %85 = vmatpush2.msra.mxu0 0.0
    %86 = vmatprep.subr.mxu0 0.0
    %87 = vmatpush2.msra.mxu0 0.0
    %88 = vmatprep.subr.mxu0 0.0
    %89 = vmatpush2.msra.mxu0 0.0
    %90 = vmatprep.subr.mxu0 0.0
    %91 = vmatpush2.msra.mxu0 0.0
    %92 = vmatprep.subr.mxu0 0.0
    %93 = vmatpush2.msra.mxu0 0.0
    %94 = vmatprep.subr.mxu0 0.0
    %95 = vmatpush2.msra.mxu0 0.0
    %96 = vmatprep.subr.mxu0 0.0
    %97 = vmatpush2.msra.mxu0 0.0
    %98 = vmatprep.subr.mxu0 0.0
    %99 = vmatpush2.msra.mxu0 0.0
    %100 = vmatprep.subr.mxu0 0.0
    %101 = vmatpush2.msra.mxu0 0.0
    %102 = vmatprep.subr.mxu0 0.0
    %103 = vmatpush2.msra.mxu0 0.0
    %104 = vmatprep.subr.mxu0 0.0
    %105 = vmatpush2.msra.mxu0 0.0
    %106 = vmatprep.subr.mxu0 0.0
    %107 = vmatpush2.msra.mxu0 0.0
    %108 = vmatprep.subr.mxu0 0.0
    %109 = vmatpush2.msra.mxu0 0.0
    %110 = vmatprep.subr.mxu0 0.0
    %111 = vmatpush2.msra.mxu0 0.0
    %112 = vmatprep.subr.mxu0 0.0
    %113 = vmatpush2.msra.mxu0 0.0
    %114 = vmatprep.subr.mxu0 0.0
    %115 = vmatpush2.msra.mxu0 0.0
    %116 = vmatprep.mubr.f32.mxu0 0.0
    %117 = vmatmul.mubr.f32.gmra.mxu0 %v43
    %v118 = vpop.f32.mrf.mxu0
    %v119 = vadd.f32 0.0, %v118
    %v120 = vpop.f32.mrf.mxu0
    %121 = vmatprep.mubr.f32.mxu0 0.0
    %122 = vmatmul.mubr.f32.gmra.mxu0 %v46
    %v123 = vpop.f32.mrf.mxu0
    %v124 = vadd.f32 0.0, %v123
    %v125 = vpop.f32.mrf.mxu0
    %126 = vdwg.mxu0
    %v127 = vmax.f32 %v119, 0.0
    %v128 = vmax.f32 %v124, 0.0
    %v129 = vld [vmem:[%s3] sm:$0xff]
    %v130 = vld [vmem:[%s3 + $0x8] sm:$0x1]
    %vm131 = vcmask 72704
    %v133 = vsel %vm131, %v127, 0
    %v136 = vsel %vm131, %v128, 0
    %vm138 = vcmask 1040384
    %v140 = vsel %vm138, %v130, 0
    %142 = vmatprep.subr.mxu0 0.0
    %143 = vmatpush1.msra.mxu0 0.0
    %144 = vmatprep.subr.mxu0 0.0
    %145 = vmatpush1.msra.mxu0 0.0
    %146 = vmatprep.subr.mxu0 0.0
    %147 = vmatpush1.msra.mxu0 0.0
    %148 = vmatprep.subr.mxu0 0.0
    %149 = vmatpush1.msra.mxu0 0.0
    %150 = vmatprep.subr.mxu0 0.0
    %151 = vmatpush1.msra.mxu0 0.0
    %152 = vmatprep.subr.mxu0 0.0
    %153 = vmatpush1.msra.mxu0 0.0
    %154 = vmatprep.subr.mxu0 0.0
    %155 = vmatpush1.msra.mxu0 0.0
    %156 = vmatprep.subr.mxu0 0.0
    %157 = vmatpush1.msra.mxu0 0.0
    %158 = vmatprep.subr.mxu0 0.0
    %159 = vmatpush1.msra.mxu0 0.0
    %160 = vmatprep.subr.mxu0 0.0
    %161 = vmatpush1.msra.mxu0 0.0
    %162 = vmatprep.subr.mxu0 0.0
    %163 = vmatpush1.msra.mxu0 0.0
    %164 = vmatprep.subr.mxu0 0.0
    %165 = vmatpush1.msra.mxu0 0.0
    %166 = vmatprep.subr.mxu0 0.0
    %167 = vmatpush1.msra.mxu0 0.0
    %168 = vmatprep.subr.mxu0 0.0
    %169 = vmatpush1.msra.mxu0 0.0
    %170 = vmatprep.subr.mxu0 0.0
    %171 = vmatpush1.msra.mxu0 %v140
    %172 = vmatprep.subr.mxu0 0.0
    %173 = vmatpush1.msra.mxu0 %v129
    %174 = vmatprep.subr.mxu0 0.0
    %175 = vmatpush2.msra.mxu0 0.0
    %176 = vmatprep.subr.mxu0 0.0
    %177 = vmatpush2.msra.mxu0 0.0
    %178 = vmatprep.subr.mxu0 0.0
    %179 = vmatpush2.msra.mxu0 0.0
    %180 = vmatprep.subr.mxu0 0.0
    %181 = vmatpush2.msra.mxu0 0.0
    %182 = vmatprep.subr.mxu0 0.0
    %183 = vmatpush2.msra.mxu0 0.0
    %184 = vmatprep.subr.mxu0 0.0
    %185 = vmatpush2.msra.mxu0 0.0
    %186 = vmatprep.subr.mxu0 0.0
    %187 = vmatpush2.msra.mxu0 0.0
    %188 = vmatprep.subr.mxu0 0.0
    %189 = vmatpush2.msra.mxu0 0.0
    %190 = vmatprep.subr.mxu0 0.0
    %191 = vmatpush2.msra.mxu0 0.0
    %192 = vmatprep.subr.mxu0 0.0
    %193 = vmatpush2.msra.mxu0 0.0
    %194 = vmatprep.subr.mxu0 0.0
    %195 = vmatpush2.msra.mxu0 0.0
    %196 = vmatprep.subr.mxu0 0.0
    %197 = vmatpush2.msra.mxu0 0.0
    %198 = vmatprep.subr.mxu0 0.0
    %199 = vmatpush2.msra.mxu0 0.0
    %200 = vmatprep.subr.mxu0 0.0
    %201 = vmatpush2.msra.mxu0 0.0
    %202 = vmatprep.subr.mxu0 0.0
    %203 = vmatpush2.msra.mxu0 0.0
    %204 = vmatprep.subr.mxu0 0.0
    %205 = vmatpush2.msra.mxu0 0.0
    %206 = vmatprep.mubr.f32.mxu0 0.0
    %207 = vmatmul.mubr.f32.gmra.mxu0 %v133
    %v208 = vpop.f32.mrf.mxu0
    %v209 = vadd.f32 0.0, %v208
    %v210 = vpop.f32.mrf.mxu0
    %211 = vmatprep.mubr.f32.mxu0 0.0
    %212 = vmatmul.mubr.f32.gmra.mxu0 %v136
    %v213 = vpop.f32.mrf.mxu0
    %v214 = vadd.f32 0.0, %v213
    %v215 = vpop.f32.mrf.mxu0
    %216 = vdwg.mxu0
    %v217 = vld [vmem:[%s4] sm:$0xff]
    %v218 = vld [vmem:[%s4 + $0x8] sm:$0xff]
    %v219 = vld [vmem:[%s4 + $0x10] sm:$0x3]
    %v221 = vsel %vm48, %v219, 0
    %223 = vmatprep.subr.mxu0 0.0
    %224 = vmatpush1.msra.mxu0 0.0
    %225 = vmatprep.subr.mxu0 0.0
    %226 = vmatpush1.msra.mxu0 0.0
    %227 = vmatprep.subr.mxu0 0.0
    %228 = vmatpush1.msra.mxu0 0.0
    %229 = vmatprep.subr.mxu0 0.0
    %230 = vmatpush1.msra.mxu0 0.0
    %231 = vmatprep.subr.mxu0 0.0
    %232 = vmatpush1.msra.mxu0 0.0
    %233 = vmatprep.subr.mxu0 0.0
    %234 = vmatpush1.msra.mxu0 0.0
    %235 = vmatprep.subr.mxu0 0.0
    %236 = vmatpush1.msra.mxu0 0.0
    %237 = vmatprep.subr.mxu0 0.0
    %238 = vmatpush1.msra.mxu0 0.0
    %239 = vmatprep.subr.mxu0 0.0
    %240 = vmatpush1.msra.mxu0 0.0
    %241 = vmatprep.subr.mxu0 0.0
    %242 = vmatpush1.msra.mxu0 0.0
    %243 = vmatprep.subr.mxu0 0.0
    %244 = vmatpush1.msra.mxu0 0.0
    %245 = vmatprep.subr.mxu0 0.0
    %246 = vmatpush1.msra.mxu0 0.0
    %247 = vmatprep.subr.mxu0 0.0
    %248 = vmatpush1.msra.mxu0 0.0
    %249 = vmatprep.subr.mxu0 0.0
    %250 = vmatpush1.msra.mxu0 %v221
    %251 = vmatprep.subr.mxu0 0.0
    %252 = vmatpush1.msra.mxu0 %v218
    %253 = vmatprep.subr.mxu0 0.0
    %254 = vmatpush1.msra.mxu0 %v217
    %255 = vmatprep.subr.mxu0 0.0
    %256 = vmatpush2.msra.mxu0 0.0
    %257 = vmatprep.subr.mxu0 0.0
    %258 = vmatpush2.msra.mxu0 0.0
    %259 = vmatprep.subr.mxu0 0.0
    %260 = vmatpush2.msra.mxu0 0.0
    %261 = vmatprep.subr.mxu0 0.0
    %262 = vmatpush2.msra.mxu0 0.0
    %263 = vmatprep.subr.mxu0 0.0
    %264 = vmatpush2.msra.mxu0 0.0
    %265 = vmatprep.subr.mxu0 0.0
    %266 = vmatpush2.msra.mxu0 0.0
    %267 = vmatprep.subr.mxu0 0.0
    %268 = vmatpush2.msra.mxu0 0.0
    %269 = vmatprep.subr.mxu0 0.0
    %270 = vmatpush2.msra.mxu0 0.0
    %271 = vmatprep.subr.mxu0 0.0
    %272 = vmatpush2.msra.mxu0 0.0
    %273 = vmatprep.subr.mxu0 0.0
    %274 = vmatpush2.msra.mxu0 0.0
    %275 = vmatprep.subr.mxu0 0.0
    %276 = vmatpush2.msra.mxu0 0.0
    %277 = vmatprep.subr.mxu0 0.0
    %278 = vmatpush2.msra.mxu0 0.0
    %279 = vmatprep.subr.mxu0 0.0
    %280 = vmatpush2.msra.mxu0 0.0
    %281 = vmatprep.subr.mxu0 0.0
    %282 = vmatpush2.msra.mxu0 0.0
    %283 = vmatprep.subr.mxu0 0.0
    %284 = vmatpush2.msra.mxu0 0.0
    %285 = vmatprep.subr.mxu0 0.0
    %286 = vmatpush2.msra.mxu0 0.0
    %287 = vmatprep.mubr.f32.mxu0 0.0
    %288 = vmatmul.mubr.f32.gmra.mxu0 %v43
    %v289 = vpop.f32.mrf.mxu0
    %v290 = vadd.f32 0.0, %v289
    %v291 = vpop.f32.mrf.mxu0
    %292 = vmatprep.mubr.f32.mxu0 0.0
    %293 = vmatmul.mubr.f32.gmra.mxu0 %v46
    %v294 = vpop.f32.mrf.mxu0
    %v295 = vadd.f32 0.0, %v294
    %v296 = vpop.f32.mrf.mxu0
    %297 = vdwg.mxu0
    %300 = vrot.lane.b32.xlu0 %v290, 108
    %v301 = vpop.permute.xlu0 %300
    %302 = vrot.lane.b32.xlu0 %v295, 108
    %v303 = vpop.permute.xlu0 %302
    %v306 = vmul.f32 %v290, %v301
    %v307 = vmul.f32 %v295, %v303
    %v308 = vld [vmem:[%s5] sm:$0xff]
    %v309 = vld [vmem:[%s5 + $0x8] sm:$0xff]
    %v310 = vld [vmem:[%s5 + $0x10] sm:$0xff]
    %v311 = vld [vmem:[%s5 + $0x18] sm:$0xff]
    %v312 = vld [vmem:[%s5 + $0x20] sm:$0xff]
    %v313 = vld [vmem:[%s5 + $0x28] sm:$0xff]
    %v314 = vld [vmem:[%s5 + $0x30] sm:$0x3]
    %v315 = vld [vmem:[%s5 + $0x38] sm:$0x3]
    %v316 = vld [vmem:[%s5 + $0x40] sm:$0x3]
    %v318 = vsel %vm41, %v209, 0
    %v321 = vsel %vm41, %v214, 0
    %v324 = vsel %vm48, %v314, 0
    %v327 = vsel %vm48, %v315, 0
    %v330 = vsel %vm48, %v316, 0
    %332 = vmatprep.subr.mxu0 0.0
    %333 = vmatpush1.msra.mxu0 0.0
    %334 = vmatprep.subr.mxu0 0.0
    %335 = vmatpush1.msra.mxu0 0.0
    %336 = vmatprep.subr.mxu0 0.0
    %337 = vmatpush1.msra.mxu0 0.0
    %338 = vmatprep.subr.mxu0 0.0
    %339 = vmatpush1.msra.mxu0 0.0
    %340 = vmatprep.subr.mxu0 0.0
    %341 = vmatpush1.msra.mxu0 0.0
    %342 = vmatprep.subr.mxu0 0.0
    %343 = vmatpush1.msra.mxu0 0.0
    %344 = vmatprep.subr.mxu0 0.0
    %345 = vmatpush1.msra.mxu0 0.0
    %346 = vmatprep.subr.mxu0 0.0
    %347 = vmatpush1.msra.mxu0 0.0
    %348 = vmatprep.subr.mxu0 0.0
    %349 = vmatpush1.msra.mxu0 0.0
    %350 = vmatprep.subr.mxu0 0.0
    %351 = vmatpush1.msra.mxu0 0.0
    %352 = vmatprep.subr.mxu0 0.0
    %353 = vmatpush1.msra.mxu0 0.0
    %354 = vmatprep.subr.mxu0 0.0
    %355 = vmatpush1.msra.mxu0 0.0
    %356 = vmatprep.subr.mxu0 0.0
    %357 = vmatpush1.msra.mxu0 0.0
    %358 = vmatprep.subr.mxu0 %v327
    %359 = vmatpush1.msra.mxu0 %v324
    %360 = vmatprep.subr.mxu0 %v312
    %361 = vmatpush1.msra.mxu0 %v311
    %362 = vmatprep.subr.mxu0 %v309
    %363 = vmatpush1.msra.mxu0 %v308
    %364 = vmatprep.subr.mxu0 0.0
    %365 = vmatpush2.msra.mxu0 0.0
    %366 = vmatprep.subr.mxu0 0.0
    %367 = vmatpush2.msra.mxu0 0.0
    %368 = vmatprep.subr.mxu0 0.0
    %369 = vmatpush2.msra.mxu0 0.0
    %370 = vmatprep.subr.mxu0 0.0
    %371 = vmatpush2.msra.mxu0 0.0
    %372 = vmatprep.subr.mxu0 0.0
    %373 = vmatpush2.msra.mxu0 0.0
    %374 = vmatprep.subr.mxu0 0.0
    %375 = vmatpush2.msra.mxu0 0.0
    %376 = vmatprep.subr.mxu0 0.0
    %377 = vmatpush2.msra.mxu0 0.0
    %378 = vmatprep.subr.mxu0 0.0
    %379 = vmatpush2.msra.mxu0 0.0
    %380 = vmatprep.subr.mxu0 0.0
    %381 = vmatpush2.msra.mxu0 0.0
    %382 = vmatprep.subr.mxu0 0.0
    %383 = vmatpush2.msra.mxu0 0.0
    %384 = vmatprep.subr.mxu0 0.0
    %385 = vmatpush2.msra.mxu0 0.0
    %386 = vmatprep.subr.mxu0 0.0
    %387 = vmatpush2.msra.mxu0 0.0
    %388 = vmatprep.subr.mxu0 0.0
    %389 = vmatpush2.msra.mxu0 0.0
    %390 = vmatprep.subr.mxu0 0.0
    %391 = vmatpush2.msra.mxu0 0.0
    %392 = vmatprep.subr.mxu0 0.0
    %393 = vmatpush2.msra.mxu0 0.0
    %394 = vmatprep.subr.mxu0 0.0
    %395 = vmatpush2.msra.mxu0 0.0
    %396 = vmatprep.mubr.f32.mxu0 0.0
    %397 = vmatmul.mubr.f32.gmra.mxu0 %v318
    %v398 = vpop.f32.mrf.mxu0
    %v399 = vadd.f32 0.0, %v398
    %v400 = vpop.f32.mrf.mxu0
    %v401 = vadd.f32 0.0, %v400
    %402 = vmatprep.mubr.f32.mxu0 0.0
    %403 = vmatmul.mubr.f32.gmra.mxu0 %v321
    %v404 = vpop.f32.mrf.mxu0
    %v405 = vadd.f32 0.0, %v404
    %v406 = vpop.f32.mrf.mxu0
    %v407 = vadd.f32 0.0, %v406
    %408 = vdwg.mxu0
    %409 = vmatprep.subr.mxu0 0.0
    %410 = vmatpush1.msra.mxu0 0.0
    %411 = vmatprep.subr.mxu0 0.0
    %412 = vmatpush1.msra.mxu0 0.0
    %413 = vmatprep.subr.mxu0 0.0
    %414 = vmatpush1.msra.mxu0 0.0
    %415 = vmatprep.subr.mxu0 0.0
    %416 = vmatpush1.msra.mxu0 0.0
    %417 = vmatprep.subr.mxu0 0.0
    %418 = vmatpush1.msra.mxu0 0.0
    %419 = vmatprep.subr.mxu0 0.0
    %420 = vmatpush1.msra.mxu0 0.0
    %421 = vmatprep.subr.mxu0 0.0
    %422 = vmatpush1.msra.mxu0 0.0
    %423 = vmatprep.subr.mxu0 0.0
    %424 = vmatpush1.msra.mxu0 0.0
    %425 = vmatprep.subr.mxu0 0.0
    %426 = vmatpush1.msra.mxu0 0.0
    %427 = vmatprep.subr.mxu0 0.0
    %428 = vmatpush1.msra.mxu0 0.0
    %429 = vmatprep.subr.mxu0 0.0
    %430 = vmatpush1.msra.mxu0 0.0
    %431 = vmatprep.subr.mxu0 0.0
    %432 = vmatpush1.msra.mxu0 0.0
    %433 = vmatprep.subr.mxu0 0.0
    %434 = vmatpush1.msra.mxu0 0.0
    %435 = vmatprep.subr.mxu0 0.0
    %436 = vmatpush1.msra.mxu0 %v330
    %437 = vmatprep.subr.mxu0 0.0
    %438 = vmatpush1.msra.mxu0 %v313
    %439 = vmatprep.subr.mxu0 0.0
    %440 = vmatpush1.msra.mxu0 %v310
    %441 = vmatprep.subr.mxu0 0.0
    %442 = vmatpush2.msra.mxu0 0.0
    %443 = vmatprep.subr.mxu0 0.0
    %444 = vmatpush2.msra.mxu0 0.0
    %445 = vmatprep.subr.mxu0 0.0
    %446 = vmatpush2.msra.mxu0 0.0
    %447 = vmatprep.subr.mxu0 0.0
    %448 = vmatpush2.msra.mxu0 0.0
    %449 = vmatprep.subr.mxu0 0.0
    %450 = vmatpush2.msra.mxu0 0.0
    %451 = vmatprep.subr.mxu0 0.0
    %452 = vmatpush2.msra.mxu0 0.0
    %453 = vmatprep.subr.mxu0 0.0
    %454 = vmatpush2.msra.mxu0 0.0
    %455 = vmatprep.subr.mxu0 0.0
    %456 = vmatpush2.msra.mxu0 0.0
    %457 = vmatprep.subr.mxu0 0.0
    %458 = vmatpush2.msra.mxu0 0.0
    %459 = vmatprep.subr.mxu0 0.0
    %460 = vmatpush2.msra.mxu0 0.0
    %461 = vmatprep.subr.mxu0 0.0
    %462 = vmatpush2.msra.mxu0 0.0
    %463 = vmatprep.subr.mxu0 0.0
    %464 = vmatpush2.msra.mxu0 0.0
    %465 = vmatprep.subr.mxu0 0.0
    %466 = vmatpush2.msra.mxu0 0.0
    %467 = vmatprep.subr.mxu0 0.0
    %468 = vmatpush2.msra.mxu0 0.0
    %469 = vmatprep.subr.mxu0 0.0
    %470 = vmatpush2.msra.mxu0 0.0
    %471 = vmatprep.subr.mxu0 0.0
    %472 = vmatpush2.msra.mxu0 0.0
    %473 = vmatprep.mubr.f32.mxu0 0.0
    %474 = vmatmul.mubr.f32.gmra.mxu0 %v318
    %v475 = vpop.f32.mrf.mxu0
    %v476 = vadd.f32 0.0, %v475
    %v477 = vpop.f32.mrf.mxu0
    %478 = vmatprep.mubr.f32.mxu0 0.0
    %479 = vmatmul.mubr.f32.gmra.mxu0 %v321
    %v480 = vpop.f32.mrf.mxu0
    %v481 = vadd.f32 0.0, %v480
    %v482 = vpop.f32.mrf.mxu0
    %483 = vdwg.mxu0
    %v484 = vld [vmem:[%s6] sm:$0xff]
    %v485 = vld [vmem:[%s6 + $0x8] sm:$0xff]
    %v486 = vld [vmem:[%s6 + $0x10] sm:$0xff]
    %v487 = vld [vmem:[%s6 + $0x18] sm:$0xff]
    %v488 = vld [vmem:[%s6 + $0x20] sm:$0xff]
    %v489 = vld [vmem:[%s6 + $0x28] sm:$0xff]
    %v490 = vld [vmem:[%s6 + $0x30] sm:$0xf]
    %v491 = vld [vmem:[%s6 + $0x38] sm:$0xf]
    %v492 = vld [vmem:[%s6 + $0x40] sm:$0xf]
    %vm493 = vcmask 162816
    %v495 = vsel %vm493, %v306, 0
    %v498 = vsel %vm493, %v307, 0
    %vm500 = vcmask 1043456
    %v502 = vsel %vm500, %v490, 0
    %v505 = vsel %vm500, %v491, 0
    %v508 = vsel %vm500, %v492, 0
    %510 = vmatprep.subr.mxu0 0.0
    %511 = vmatpush1.msra.mxu0 0.0
    %512 = vmatprep.subr.mxu0 0.0
    %513 = vmatpush1.msra.mxu0 0.0
    %514 = vmatprep.subr.mxu0 0.0
    %515 = vmatpush1.msra.mxu0 0.0
    %516 = vmatprep.subr.mxu0 0.0
    %517 = vmatpush1.msra.mxu0 0.0
    %518 = vmatprep.subr.mxu0 0.0
    %519 = vmatpush1.msra.mxu0 0.0
    %520 = vmatprep.subr.mxu0 0.0
    %521 = vmatpush1.msra.mxu0 0.0
    %522 = vmatprep.subr.mxu0 0.0
    %523 = vmatpush1.msra.mxu0 0.0
    %524 = vmatprep.subr.mxu0 0.0
    %525 = vmatpush1.msra.mxu0 0.0
    %526 = vmatprep.subr.mxu0 0.0
    %527 = vmatpush1.msra.mxu0 0.0
    %528 = vmatprep.subr.mxu0 0.0
    %529 = vmatpush1.msra.mxu0 0.0
    %530 = vmatprep.subr.mxu0 0.0
    %531 = vmatpush1.msra.mxu0 0.0
    %532 = vmatprep.subr.mxu0 0.0
    %533 = vmatpush1.msra.mxu0 0.0
    %534 = vmatprep.subr.mxu0 0.0
    %535 = vmatpush1.msra.mxu0 0.0
    %536 = vmatprep.subr.mxu0 %v505
    %537 = vmatpush1.msra.mxu0 %v502
    %538 = vmatprep.subr.mxu0 %v488
    %539 = vmatpush1.msra.mxu0 %v487
    %540 = vmatprep.subr.mxu0 %v485
    %541 = vmatpush1.msra.mxu0 %v484
    %542 = vmatprep.subr.mxu0 0.0
    %543 = vmatpush2.msra.mxu0 0.0
    %544 = vmatprep.subr.mxu0 0.0
    %545 = vmatpush2.msra.mxu0 0.0
    %546 = vmatprep.subr.mxu0 0.0
    %547 = vmatpush2.msra.mxu0 0.0
    %548 = vmatprep.subr.mxu0 0.0
    %549 = vmatpush2.msra.mxu0 0.0
    %550 = vmatprep.subr.mxu0 0.0
    %551 = vmatpush2.msra.mxu0 0.0
    %552 = vmatprep.subr.mxu0 0.0
    %553 = vmatpush2.msra.mxu0 0.0
    %554 = vmatprep.subr.mxu0 0.0
    %555 = vmatpush2.msra.mxu0 0.0
    %556 = vmatprep.subr.mxu0 0.0
    %557 = vmatpush2.msra.mxu0 0.0
    %558 = vmatprep.subr.mxu0 0.0
    %559 = vmatpush2.msra.mxu0 0.0
    %560 = vmatprep.subr.mxu0 0.0
    %561 = vmatpush2.msra.mxu0 0.0
    %562 = vmatprep.subr.mxu0 0.0
    %563 = vmatpush2.msra.mxu0 0.0
    %564 = vmatprep.subr.mxu0 0.0
    %565 = vmatpush2.msra.mxu0 0.0
    %566 = vmatprep.subr.mxu0 0.0
    %567 = vmatpush2.msra.mxu0 0.0
    %568 = vmatprep.subr.mxu0 0.0
    %569 = vmatpush2.msra.mxu0 0.0
    %570 = vmatprep.subr.mxu0 0.0
    %571 = vmatpush2.msra.mxu0 0.0
    %572 = vmatprep.subr.mxu0 0.0
    %573 = vmatpush2.msra.mxu0 0.0
    %574 = vmatprep.mubr.f32.mxu0 0.0
    %575 = vmatmul.mubr.f32.gmra.mxu0 %v495
    %v576 = vpop.f32.mrf.mxu0
    %v577 = vadd.f32 0.0, %v576
    %v578 = vpop.f32.mrf.mxu0
    %v579 = vadd.f32 0.0, %v578
    %580 = vmatprep.mubr.f32.mxu0 0.0
    %581 = vmatmul.mubr.f32.gmra.mxu0 %v498
    %v582 = vpop.f32.mrf.mxu0
    %v583 = vadd.f32 0.0, %v582
    %v584 = vpop.f32.mrf.mxu0
    %v585 = vadd.f32 0.0, %v584
    %586 = vdwg.mxu0
    %587 = vmatprep.subr.mxu0 0.0
    %588 = vmatpush1.msra.mxu0 0.0
    %589 = vmatprep.subr.mxu0 0.0
    %590 = vmatpush1.msra.mxu0 0.0
    %591 = vmatprep.subr.mxu0 0.0
    %592 = vmatpush1.msra.mxu0 0.0
    %593 = vmatprep.subr.mxu0 0.0
    %594 = vmatpush1.msra.mxu0 0.0
    %595 = vmatprep.subr.mxu0 0.0
    %596 = vmatpush1.msra.mxu0 0.0
    %597 = vmatprep.subr.mxu0 0.0
    %598 = vmatpush1.msra.mxu0 0.0
    %599 = vmatprep.subr.mxu0 0.0
    %600 = vmatpush1.msra.mxu0 0.0
    %601 = vmatprep.subr.mxu0 0.0
    %602 = vmatpush1.msra.mxu0 0.0
    %603 = vmatprep.subr.mxu0 0.0
    %604 = vmatpush1.msra.mxu0 0.0
    %605 = vmatprep.subr.mxu0 0.0
    %606 = vmatpush1.msra.mxu0 0.0
    %607 = vmatprep.subr.mxu0 0.0
    %608 = vmatpush1.msra.mxu0 0.0
    %609 = vmatprep.subr.mxu0 0.0
    %610 = vmatpush1.msra.mxu0 0.0
    %611 = vmatprep.subr.mxu0 0.0
    %612 = vmatpush1.msra.mxu0 0.0
    %613 = vmatprep.subr.mxu0 0.0
    %614 = vmatpush1.msra.mxu0 %v508
    %615 = vmatprep.subr.mxu0 0.0
    %616 = vmatpush1.msra.mxu0 %v489
    %617 = vmatprep.subr.mxu0 0.0
    %618 = vmatpush1.msra.mxu0 %v486
    %619 = vmatprep.subr.mxu0 0.0
    %620 = vmatpush2.msra.mxu0 0.0
    %621 = vmatprep.subr.mxu0 0.0
    %622 = vmatpush2.msra.mxu0 0.0
    %623 = vmatprep.subr.mxu0 0.0
    %624 = vmatpush2.msra.mxu0 0.0
    %625 = vmatprep.subr.mxu0 0.0
    %626 = vmatpush2.msra.mxu0 0.0
    %627 = vmatprep.subr.mxu0 0.0
    %628 = vmatpush2.msra.mxu0 0.0
    %629 = vmatprep.subr.mxu0 0.0
    %630 = vmatpush2.msra.mxu0 0.0
    %631 = vmatprep.subr.mxu0 0.0
    %632 = vmatpush2.msra.mxu0 0.0
    %633 = vmatprep.subr.mxu0 0.0
    %634 = vmatpush2.msra.mxu0 0.0
    %635 = vmatprep.subr.mxu0 0.0
    %636 = vmatpush2.msra.mxu0 0.0
    %637 = vmatprep.subr.mxu0 0.0
    %638 = vmatpush2.msra.mxu0 0.0
    %639 = vmatprep.subr.mxu0 0.0
    %640 = vmatpush2.msra.mxu0 0.0
    %641 = vmatprep.subr.mxu0 0.0
    %642 = vmatpush2.msra.mxu0 0.0
    %643 = vmatprep.subr.mxu0 0.0
    %644 = vmatpush2.msra.mxu0 0.0
    %645 = vmatprep.subr.mxu0 0.0
    %646 = vmatpush2.msra.mxu0 0.0
    %647 = vmatprep.subr.mxu0 0.0
    %648 = vmatpush2.msra.mxu0 0.0
    %649 = vmatprep.subr.mxu0 0.0
    %650 = vmatpush2.msra.mxu0 0.0
    %651 = vmatprep.mubr.f32.mxu0 0.0
    %652 = vmatmul.mubr.f32.gmra.mxu0 %v495
    %v653 = vpop.f32.mrf.mxu0
    %v654 = vadd.f32 0.0, %v653
    %v655 = vpop.f32.mrf.mxu0
    %656 = vmatprep.mubr.f32.mxu0 0.0
    %657 = vmatmul.mubr.f32.gmra.mxu0 %v498
    %v658 = vpop.f32.mrf.mxu0
    %v659 = vadd.f32 0.0, %v658
    %v660 = vpop.f32.mrf.mxu0
    %661 = vdwg.mxu0
    %v662 = vmul.f32 %v399, %v577
    %v663 = vmul.f32 %v401, %v579
    %v664 = vmul.f32 %v476, %v654
    %v665 = vmul.f32 %v405, %v583
    %v666 = vmul.f32 %v407, %v585
    %v667 = vmul.f32 %v481, %v659
    %v668 = vld [vmem:[%s7] sm:$0xff]
    %v669 = vld [vmem:[%s7 + $0x8] sm:$0xff]
    %v670 = vld [vmem:[%s7 + $0x10] sm:$0xff]
    %v671 = vld [vmem:[%s7 + $0x18] sm:$0xff]
    %v672 = vld [vmem:[%s7 + $0x20] sm:$0xff]
    %v673 = vld [vmem:[%s7 + $0x28] sm:$0xff]
    %v674 = vld [vmem:[%s7 + $0x30] sm:$0xff]
    %v675 = vld [vmem:[%s7 + $0x38] sm:$0xff]
    %v676 = vld [vmem:[%s7 + $0x40] sm:$0xff]
    %v677 = vld [vmem:[%s7 + $0x48] sm:$0xff]
    %v678 = vld [vmem:[%s7 + $0x50] sm:$0xff]
    %v679 = vld [vmem:[%s7 + $0x58] sm:$0xff]
    %v680 = vld [vmem:[%s7 + $0x60] sm:$0xff]
    %v681 = vld [vmem:[%s7 + $0x68] sm:$0xff]
    %v682 = vld [vmem:[%s7 + $0x70] sm:$0xff]
    %v683 = vld [vmem:[%s7 + $0x78] sm:$0xff]
    %v684 = vld [vmem:[%s7 + $0x80] sm:$0xff]
    %v685 = vld [vmem:[%s7 + $0x88] sm:$0xff]
    %v686 = vld [vmem:[%s7 + $0x90] sm:$0xff]
    %v687 = vld [vmem:[%s7 + $0x98] sm:$0xff]
    %v688 = vld [vmem:[%s7 + $0xa0] sm:$0xff]
    %v689 = vld [vmem:[%s7 + $0xa8] sm:$0xff]
    %v690 = vld [vmem:[%s7 + $0xb0] sm:$0xff]
    %v691 = vld [vmem:[%s7 + $0xb8] sm:$0xff]
    %v692 = vld [vmem:[%s7 + $0xc0] sm:$0xff]
    %v693 = vld [vmem:[%s7 + $0xc8] sm:$0xff]
    %v694 = vld [vmem:[%s7 + $0xd0] sm:$0xff]
    %v695 = vld [vmem:[%s7 + $0xd8] sm:$0xff]
    %v696 = vld [vmem:[%s7 + $0xe0] sm:$0xff]
    %v697 = vld [vmem:[%s7 + $0xe8] sm:$0xff]
    %v698 = vld [vmem:[%s7 + $0xf0] sm:$0xff]
    %v699 = vld [vmem:[%s7 + $0xf8] sm:$0xff]
    %v700 = vld [vmem:[%s7 + $0x100] sm:$0xff]
    %v701 = vld [vmem:[%s7 + $0x108] sm:$0xff]
    %v702 = vld [vmem:[%s7 + $0x110] sm:$0xff]
    %v703 = vld [vmem:[%s7 + $0x118] sm:$0xff]
    %v704 = vld [vmem:[%s7 + $0x120] sm:$0xff]
    %v705 = vld [vmem:[%s7 + $0x128] sm:$0xff]
    %v706 = vld [vmem:[%s7 + $0x130] sm:$0xff]
    %v707 = vld [vmem:[%s7 + $0x138] sm:$0xff]
    %v708 = vld [vmem:[%s7 + $0x140] sm:$0xff]
    %v709 = vld [vmem:[%s7 + $0x148] sm:$0xff]
    %v710 = vld [vmem:[%s7 + $0x150] sm:$0xff]
    %v711 = vld [vmem:[%s7 + $0x158] sm:$0xff]
    %v712 = vld [vmem:[%s7 + $0x160] sm:$0xff]
    %vm713 = vcmask 850944
    %v715 = vsel %vm713, %v664, 0
    %v718 = vsel %vm713, %v667, 0
    %720 = vmatprep.subr.mxu0 0.0
    %721 = vmatpush1.msra.mxu0 %v683
    %722 = vmatprep.subr.mxu0 0.0
    %723 = vmatpush1.msra.mxu0 %v682
    %724 = vmatprep.subr.mxu0 0.0
    %725 = vmatpush1.msra.mxu0 %v681
    %726 = vmatprep.subr.mxu0 0.0
    %727 = vmatpush1.msra.mxu0 %v680
    %728 = vmatprep.subr.mxu0 0.0
    %729 = vmatpush1.msra.mxu0 %v679
    %730 = vmatprep.subr.mxu0 0.0
    %731 = vmatpush1.msra.mxu0 %v678
    %732 = vmatprep.subr.mxu0 0.0
    %733 = vmatpush1.msra.mxu0 %v677
    %734 = vmatprep.subr.mxu0 0.0
    %735 = vmatpush1.msra.mxu0 %v676
    %736 = vmatprep.subr.mxu0 0.0
    %737 = vmatpush1.msra.mxu0 %v675
    %738 = vmatprep.subr.mxu0 0.0
    %739 = vmatpush1.msra.mxu0 %v674
    %740 = vmatprep.subr.mxu0 0.0
    %741 = vmatpush1.msra.mxu0 %v673
    %742 = vmatprep.subr.mxu0 0.0
    %743 = vmatpush1.msra.mxu0 %v672
    %744 = vmatprep.subr.mxu0 0.0
    %745 = vmatpush1.msra.mxu0 %v671
    %746 = vmatprep.subr.mxu0 0.0
    %747 = vmatpush1.msra.mxu0 %v670
    %748 = vmatprep.subr.mxu0 0.0
    %749 = vmatpush1.msra.mxu0 %v669
    %750 = vmatprep.subr.mxu0 0.0
    %751 = vmatpush1.msra.mxu0 %v668
    %752 = vmatprep.subr.mxu0 0.0
    %753 = vmatpush2.msra.mxu0 %v699
    %754 = vmatprep.subr.mxu0 0.0
    %755 = vmatpush2.msra.mxu0 %v698
    %756 = vmatprep.subr.mxu0 0.0
    %757 = vmatpush2.msra.mxu0 %v697
    %758 = vmatprep.subr.mxu0 0.0
    %759 = vmatpush2.msra.mxu0 %v696
    %760 = vmatprep.subr.mxu0 0.0
    %761 = vmatpush2.msra.mxu0 %v695
    %762 = vmatprep.subr.mxu0 0.0
    %763 = vmatpush2.msra.mxu0 %v694
    %764 = vmatprep.subr.mxu0 0.0
    %765 = vmatpush2.msra.mxu0 %v693
    %766 = vmatprep.subr.mxu0 0.0
    %767 = vmatpush2.msra.mxu0 %v692
    %768 = vmatprep.subr.mxu0 0.0
    %769 = vmatpush2.msra.mxu0 %v691
    %770 = vmatprep.subr.mxu0 0.0
    %771 = vmatpush2.msra.mxu0 %v690
    %772 = vmatprep.subr.mxu0 0.0
    %773 = vmatpush2.msra.mxu0 %v689
    %774 = vmatprep.subr.mxu0 0.0
    %775 = vmatpush2.msra.mxu0 %v688
    %776 = vmatprep.subr.mxu0 0.0
    %777 = vmatpush2.msra.mxu0 %v687
    %778 = vmatprep.subr.mxu0 0.0
    %779 = vmatpush2.msra.mxu0 %v686
    %780 = vmatprep.subr.mxu0 0.0
    %781 = vmatpush2.msra.mxu0 %v685
    %782 = vmatprep.subr.mxu0 0.0
    %783 = vmatpush2.msra.mxu0 %v684
    %784 = vmatprep.mubr.f32.mxu0 %v663
    %785 = vmatmul.mubr.f32.gmra.mxu0 %v662
    %v786 = vpop.f32.mrf.mxu0
    %v787 = vadd.f32 0.0, %v786
    %v788 = vpop.f32.mrf.mxu0
    %789 = vmatprep.mubr.f32.mxu0 %v666
    %790 = vmatmul.mubr.f32.gmra.mxu0 %v665
    %v791 = vpop.f32.mrf.mxu0
    %v792 = vadd.f32 0.0, %v791
    %v793 = vpop.f32.mrf.mxu0
    %794 = vdwg.mxu0
    %795 = vmatprep.subr.mxu0 0.0
    %796 = vmatpush1.msra.mxu0 0.0
    %797 = vmatprep.subr.mxu0 0.0
    %798 = vmatpush1.msra.mxu0 0.0
    %799 = vmatprep.subr.mxu0 0.0
    %800 = vmatpush1.msra.mxu0 0.0
    %801 = vmatprep.subr.mxu0 0.0
    %802 = vmatpush1.msra.mxu0 %v712
    %803 = vmatprep.subr.mxu0 0.0
    %804 = vmatpush1.msra.mxu0 %v711
    %805 = vmatprep.subr.mxu0 0.0
    %806 = vmatpush1.msra.mxu0 %v710
    %807 = vmatprep.subr.mxu0 0.0
    %808 = vmatpush1.msra.mxu0 %v709
    %809 = vmatprep.subr.mxu0 0.0
    %810 = vmatpush1.msra.mxu0 %v708
    %811 = vmatprep.subr.mxu0 0.0
    %812 = vmatpush1.msra.mxu0 %v707
    %813 = vmatprep.subr.mxu0 0.0
    %814 = vmatpush1.msra.mxu0 %v706
    %815 = vmatprep.subr.mxu0 0.0
    %816 = vmatpush1.msra.mxu0 %v705
    %817 = vmatprep.subr.mxu0 0.0
    %818 = vmatpush1.msra.mxu0 %v704
    %819 = vmatprep.subr.mxu0 0.0
    %820 = vmatpush1.msra.mxu0 %v703
    %821 = vmatprep.subr.mxu0 0.0
    %822 = vmatpush1.msra.mxu0 %v702
    %823 = vmatprep.subr.mxu0 0.0
    %824 = vmatpush1.msra.mxu0 %v701
    %825 = vmatprep.subr.mxu0 0.0
    %826 = vmatpush1.msra.mxu0 %v700
    %827 = vmatprep.subr.mxu0 0.0
    %828 = vmatpush2.msra.mxu0 0.0
    %829 = vmatprep.subr.mxu0 0.0
    %830 = vmatpush2.msra.mxu0 0.0
    %831 = vmatprep.subr.mxu0 0.0
    %832 = vmatpush2.msra.mxu0 0.0
    %833 = vmatprep.subr.mxu0 0.0
    %834 = vmatpush2.msra.mxu0 0.0
    %835 = vmatprep.subr.mxu0 0.0
    %836 = vmatpush2.msra.mxu0 0.0
    %837 = vmatprep.subr.mxu0 0.0
    %838 = vmatpush2.msra.mxu0 0.0
    %839 = vmatprep.subr.mxu0 0.0
    %840 = vmatpush2.msra.mxu0 0.0
    %841 = vmatprep.subr.mxu0 0.0
    %842 = vmatpush2.msra.mxu0 0.0
    %843 = vmatprep.subr.mxu0 0.0
    %844 = vmatpush2.msra.mxu0 0.0
    %845 = vmatprep.subr.mxu0 0.0
    %846 = vmatpush2.msra.mxu0 0.0
    %847 = vmatprep.subr.mxu0 0.0
    %848 = vmatpush2.msra.mxu0 0.0
    %849 = vmatprep.subr.mxu0 0.0
    %850 = vmatpush2.msra.mxu0 0.0
    %851 = vmatprep.subr.mxu0 0.0
    %852 = vmatpush2.msra.mxu0 0.0
    %853 = vmatprep.subr.mxu0 0.0
    %854 = vmatpush2.msra.mxu0 0.0
    %855 = vmatprep.subr.mxu0 0.0
    %856 = vmatpush2.msra.mxu0 0.0
    %857 = vmatprep.subr.mxu0 0.0
    %858 = vmatpush2.msra.mxu0 0.0
    %859 = vmatprep.mubr.f32.mxu0 0.0
    %860 = vmatmul.mubr.f32.gmra.mxu0 %v715
    %v861 = vpop.f32.mrf.mxu0
    %v862 = vadd.f32 %v787, %v861
    %v863 = vpop.f32.mrf.mxu0
    %864 = vmatprep.mubr.f32.mxu0 0.0
    %865 = vmatmul.mubr.f32.gmra.mxu0 %v718
    %v866 = vpop.f32.mrf.mxu0
    %v867 = vadd.f32 %v792, %v866
    %v868 = vpop.f32.mrf.mxu0
    %869 = vdwg.mxu0
    %v870 = vld [vmem:[%s8] sm:$0xff]
    %v871 = vld [vmem:[%s8 + $0x8] sm:$0xff]
    %v872 = vld [vmem:[%s1] sm:$0xff]
    %v873 = vld [vmem:[%s1 + $0x8] sm:$0xff]
    %vm874 = vcmask 130048
    %v876 = vsel %vm874, %v870, 0
    %v879 = vsel %vm874, %v871, 0
    %881 = vmatprep.subr.mxu0 0.0
    %882 = vmatpush1.msra.mxu0 0.0
    %883 = vmatprep.subr.mxu0 0.0
    %884 = vmatpush1.msra.mxu0 0.0
    %885 = vmatprep.subr.mxu0 0.0
    %886 = vmatpush1.msra.mxu0 0.0
    %887 = vmatprep.subr.mxu0 0.0
    %888 = vmatpush1.msra.mxu0 0.0
    %889 = vmatprep.subr.mxu0 0.0
    %890 = vmatpush1.msra.mxu0 0.0
    %891 = vmatprep.subr.mxu0 0.0
    %892 = vmatpush1.msra.mxu0 0.0
    %893 = vmatprep.subr.mxu0 0.0
    %894 = vmatpush1.msra.mxu0 0.0
    %895 = vmatprep.subr.mxu0 0.0
    %896 = vmatpush1.msra.mxu0 0.0
    %897 = vmatprep.subr.mxu0 0.0
    %898 = vmatpush1.msra.mxu0 0.0
    %899 = vmatprep.subr.mxu0 0.0
    %900 = vmatpush1.msra.mxu0 0.0
    %901 = vmatprep.subr.mxu0 0.0
    %902 = vmatpush1.msra.mxu0 0.0
    %903 = vmatprep.subr.mxu0 0.0
    %904 = vmatpush1.msra.mxu0 0.0
    %905 = vmatprep.subr.mxu0 0.0
    %906 = vmatpush1.msra.mxu0 0.0
    %907 = vmatprep.subr.mxu0 0.0
    %908 = vmatpush1.msra.mxu0 0.0
    %909 = vmatprep.subr.mxu0 0.0
    %910 = vmatpush1.msra.mxu0 %v867
    %911 = vmatprep.subr.mxu0 0.0
    %912 = vmatpush1.msra.mxu0 %v862
    %913 = vmatprep.subr.mxu0 0.0
    %914 = vmatpush2.msra.mxu0 0.0
    %915 = vmatprep.subr.mxu0 0.0
    %916 = vmatpush2.msra.mxu0 0.0
    %917 = vmatprep.subr.mxu0 0.0
    %918 = vmatpush2.msra.mxu0 0.0
    %919 = vmatprep.subr.mxu0 0.0
    %920 = vmatpush2.msra.mxu0 0.0
    %921 = vmatprep.subr.mxu0 0.0
    %922 = vmatpush2.msra.mxu0 0.0
    %923 = vmatprep.subr.mxu0 0.0
    %924 = vmatpush2.msra.mxu0 0.0
    %925 = vmatprep.subr.mxu0 0.0
    %926 = vmatpush2.msra.mxu0 0.0
    %927 = vmatprep.subr.mxu0 0.0
    %928 = vmatpush2.msra.mxu0 0.0
    %929 = vmatprep.subr.mxu0 0.0
    %930 = vmatpush2.msra.mxu0 0.0
    %931 = vmatprep.subr.mxu0 0.0
    %932 = vmatpush2.msra.mxu0 0.0
    %933 = vmatprep.subr.mxu0 0.0
    %934 = vmatpush2.msra.mxu0 0.0
    %935 = vmatprep.subr.mxu0 0.0
    %936 = vmatpush2.msra.mxu0 0.0
    %937 = vmatprep.subr.mxu0 0.0
    %938 = vmatpush2.msra.mxu0 0.0
    %939 = vmatprep.subr.mxu0 0.0
    %940 = vmatpush2.msra.mxu0 0.0
    %941 = vmatprep.subr.mxu0 0.0
    %942 = vmatpush2.msra.mxu0 0.0
    %943 = vmatprep.subr.mxu0 0.0
    %944 = vmatpush2.msra.mxu0 0.0
    %945 = vmatprep.mubr.f32.mxu0 0.0
    %946 = vmatmul.mubr.f32.gmra.mxu0 %v876
    %v947 = vpop.f32.mrf.mxu0
    %v948 = vadd.f32 %v872, %v947
    %v949 = vpop.f32.mrf.mxu0
    %950 = vmatprep.mubr.f32.mxu0 0.0
    %951 = vmatmul.mubr.f32.gmra.mxu0 %v879
    %v952 = vpop.f32.mrf.mxu0
    %v953 = vadd.f32 %v873, %v952
    %v954 = vpop.f32.mrf.mxu0
    %955 = vdwg.mxu0
    %v956 = vld [vmem:[%s9] sm:$0xff]
    %v957 = vld [vmem:[%s9 + $0x8] sm:$0xff]
    %vm958 = vcmask 80896
    %v959 = vsel %vm958, %v948, 0.0
    %v960 = vsel %vm958, %v953, 0.0
    %v961 = vadd.f32 %v959, %v960
    %v962 = vrot.slane %v961, 4
    %v963 = vadd.f32 %v961, %v962
    %v964 = vrot.slane %v963, 2
    %v965 = vadd.f32 %v963, %v964
    %v966 = vrot.slane %v965, 1
    %v967 = vadd.f32 %v965, %v966
    %v968 = vrcp.pop 16.0
    %v969 = vmul.f32 %v967, %v968
    %v970 = vmul.f32 %v969, %v957
    %v971 = vlaneseq
    %v972 = vshrl.u32 %v971, 7
    %v973 = vsub.s32 2, %v972
    %v974 = vrot.slane %v970, %v973
    %v975 = vsub.f32 %v948, %v974
    %v976 = vsub.f32 %v953, %v974
    %v977 = vmul.f32 %v975, %v975
    %v978 = vmul.f32 %v976, %v976
    %v980 = vsel %vm958, %v977, 0
    %v983 = vsel %vm958, %v978, 0
    %v986 = vsel %vm48, %v957, 0
    %988 = vmatprep.subr.mxu0 0.0
    %989 = vmatpush1.msra.mxu0 0.0
    %990 = vmatprep.subr.mxu0 0.0
    %991 = vmatpush1.msra.mxu0 0.0
    %992 = vmatprep.subr.mxu0 0.0
    %993 = vmatpush1.msra.mxu0 0.0
    %994 = vmatprep.subr.mxu0 0.0
    %995 = vmatpush1.msra.mxu0 0.0
    %996 = vmatprep.subr.mxu0 0.0
    %997 = vmatpush1.msra.mxu0 0.0
    %998 = vmatprep.subr.mxu0 0.0
    %999 = vmatpush1.msra.mxu0 0.0
    %1000 = vmatprep.subr.mxu0 0.0
    %1001 = vmatpush1.msra.mxu0 0.0
    %1002 = vmatprep.subr.mxu0 0.0
    %1003 = vmatpush1.msra.mxu0 0.0
    %1004 = vmatprep.subr.mxu0 0.0
    %1005 = vmatpush1.msra.mxu0 0.0
    %1006 = vmatprep.subr.mxu0 0.0
    %1007 = vmatpush1.msra.mxu0 0.0
    %1008 = vmatprep.subr.mxu0 0.0
    %1009 = vmatpush1.msra.mxu0 0.0
    %1010 = vmatprep.subr.mxu0 0.0
    %1011 = vmatpush1.msra.mxu0 0.0
    %1012 = vmatprep.subr.mxu0 0.0
    %1013 = vmatpush1.msra.mxu0 0.0
    %1014 = vmatprep.subr.mxu0 0.0
    %1015 = vmatpush1.msra.mxu0 0.0
    %1016 = vmatprep.subr.mxu0 0.0
    %1017 = vmatpush1.msra.mxu0 %v986
    %1018 = vmatprep.subr.mxu0 0.0
    %1019 = vmatpush1.msra.mxu0 %v956
    %1020 = vmatprep.subr.mxu0 0.0
    %1021 = vmatpush2.msra.mxu0 0.0
    %1022 = vmatprep.subr.mxu0 0.0
    %1023 = vmatpush2.msra.mxu0 0.0
    %1024 = vmatprep.subr.mxu0 0.0
    %1025 = vmatpush2.msra.mxu0 0.0
    %1026 = vmatprep.subr.mxu0 0.0
    %1027 = vmatpush2.msra.mxu0 0.0
    %1028 = vmatprep.subr.mxu0 0.0
    %1029 = vmatpush2.msra.mxu0 0.0
    %1030 = vmatprep.subr.mxu0 0.0
    %1031 = vmatpush2.msra.mxu0 0.0
    %1032 = vmatprep.subr.mxu0 0.0
    %1033 = vmatpush2.msra.mxu0 0.0
    %1034 = vmatprep.subr.mxu0 0.0
    %1035 = vmatpush2.msra.mxu0 0.0
    %1036 = vmatprep.subr.mxu0 0.0
    %1037 = vmatpush2.msra.mxu0 0.0
    %1038 = vmatprep.subr.mxu0 0.0
    %1039 = vmatpush2.msra.mxu0 0.0
    %1040 = vmatprep.subr.mxu0 0.0
    %1041 = vmatpush2.msra.mxu0 0.0
    %1042 = vmatprep.subr.mxu0 0.0
    %1043 = vmatpush2.msra.mxu0 0.0
    %1044 = vmatprep.subr.mxu0 0.0
    %1045 = vmatpush2.msra.mxu0 0.0
    %1046 = vmatprep.subr.mxu0 0.0
    %1047 = vmatpush2.msra.mxu0 0.0
    %1048 = vmatprep.subr.mxu0 0.0
    %1049 = vmatpush2.msra.mxu0 0.0
    %1050 = vmatprep.subr.mxu0 0.0
    %1051 = vmatpush2.msra.mxu0 0.0
    %1052 = vmatprep.mubr.f32.mxu0 0.0
    %1053 = vmatmul.mubr.f32.gmra.mxu0 %v980
    %v1054 = vpop.f32.mrf.mxu0
    %v1055 = vadd.f32 0.0, %v1054
    %v1056 = vpop.f32.mrf.mxu0
    %1057 = vmatprep.mubr.f32.mxu0 0.0
    %1058 = vmatmul.mubr.f32.gmra.mxu0 %v983
    %v1059 = vpop.f32.mrf.mxu0
    %v1060 = vadd.f32 0.0, %v1059
    %v1061 = vpop.f32.mrf.mxu0
    %1062 = vdwg.mxu0
    %v1063 = vsel %vm958, %v1055, 0.0
    %v1064 = vsel %vm958, %v1060, 0.0
    %v1065 = vadd.f32 %v1063, %v1064
    %v1066 = vrot.slane %v1065, 4
    %v1067 = vadd.f32 %v1065, %v1066
    %v1068 = vrot.slane %v1067, 2
    %v1069 = vadd.f32 %v1067, %v1068
    %v1070 = vrot.slane %v1069, 1
    %v1071 = vadd.f32 %v1069, %v1070
    %v1072 = vmul.f32 %v1071, %v968
    %v1073 = vadd.f32 %v1072, 1e-05
    %v1074 = vrsqrt.pop %v1073
    %v1075 = vmul.f32 %v1074, %v957
    %v1076 = vlaneseq
    %v1077 = vshrl.u32 %v1076, 7
    %v1078 = vsub.s32 3, %v1077
    %v1079 = vrot.slane %v1075, %v1078
    %v1080 = vmul.f32 %v975, %v1079
    %v1081 = vmul.f32 %v976, %v1079
    %v1082 = vlaneseq
    %v1083 = vshrl.u32 %v1082, 7
    %v1084 = vsub.s32 4, %v1083
    %v1085 = vrot.slane %v957, %v1084
    %v1086 = vadd.f32 %v1080, %v1085
    %v1087 = vadd.f32 %v1081, %v1085
    %1088 = vst.msk [vmem:[#allocation2] sm:$0xff] %vm958, %v1086
    %1089 = vst.msk [vmem:[#allocation2 + $0x8] sm:$0xff] %vm958, %v1087
    // Predicated region
    $region42: #{tpu_custom_call.1} parent=1 // pred_check
      _
    $region43: #{tpu_custom_call.1} parent=1 // pred_check_branch
      %1091 = sbr.rel (0) target = $region45
    $region44: #{tpu_custom_call.1} parent=1 // pred_region
      %s1093 = ssub.s32 256, 256
      %1094 = vsyncadd [#allocation3], %s1093
      %s1095 = sshll.u32 [#allocation2], 4
      %s1096 = int_to_ptr.vmem [resolvable:$true] %s1095
      %1101 = dma.vmem_to_hbm [thread:$0]  %s1096, 256, %s10, [#allocation3], 128, 128, 8
    $region45: #{tpu_custom_call.1} parent=1 // pred_fallthru
      _
    // Predicated region
    $region46: #{tpu_custom_call.1} parent=1 // pred_check
      _
    $region47: #{tpu_custom_call.1} parent=1 // pred_check_branch
      %1103 = sbr.rel (0) target = $region49
    $region48: #{tpu_custom_call.1} parent=1 // pred_region
      %1104 = dma.done [#allocation3], 256
    $region49: #{tpu_custom_call.1} parent=1 // pred_fallthru
      _
    %1105 = vsyncpa [#allocation3], 1

</llo_original>
